<compile_context>
chip_gen: v7x
topology: tpu7x:2x2x1
jax: 0.10.0
libtpu: 0.0.40
codegen_flags: <defaults>
</compile_context>

<pallas_src>
import functools

import jax
import jax.numpy as jnp
from jax import lax
from jax.experimental import pallas as pl
from jax.experimental.pallas import tpu as pltpu

_LANE_W = 512          # lane-dense last dim (multiple of 128)
_MAX_BLOCK_ROWS = 256  # 256 * 512 * 4B = 512 KiB per block buffer


def _complex_dropout_kernel(r_ref, i_ref, u_ref, or_ref, oi_ref, *, p):
    # keep w.p. (1-p); kept elements scaled by 1/(1-p)  (nn.Dropout train mode)
    scale = jnp.float32(1.0 / (1.0 - p)) if p < 1.0 else jnp.float32(0.0)
    m = jnp.where(u_ref[...] >= jnp.float32(p), scale, jnp.float32(0.0))
    # mag*cos(phase) == real * m ; mag*sin(phase) == (imag + 1e-10) * m
    or_ref[...] = r_ref[...] * m
    oi_ref[...] = (i_ref[...] + jnp.float32(1e-10)) * m


@functools.partial(jax.jit, static_argnames=("p",))
def complex_dropout(x, key, *, p=0.1):
    """Pallas implementation of ComplexDropout.forward (training mode)."""
    orig_shape = x.shape
    real = jnp.real(x).astype(jnp.float32).reshape(-1)
    imag = jnp.imag(x).astype(jnp.float32).reshape(-1)
    n = real.shape[0]

    # Tile geometry (static): lane-dense 512-wide rows, sublane-aligned row blocks.
    rows_needed = pl.cdiv(n, _LANE_W)
    block_rows = min(_MAX_BLOCK_ROWS, ((rows_needed + 7) // 8) * 8)
    rows = pl.cdiv(rows_needed, block_rows) * block_rows
    pad = rows * _LANE_W - n

    real2d = jnp.pad(real, (0, pad)).reshape(rows, _LANE_W)
    imag2d = jnp.pad(imag, (0, pad)).reshape(rows, _LANE_W)
    # Uniform randoms for the dropout mask (one value per padded element).
    u2d = jax.random.uniform(key, (rows, _LANE_W), dtype=jnp.float32)

    num_blocks = rows // block_rows
    blk = pl.BlockSpec((block_rows, _LANE_W), lambda i: (i, 0))

    kernel = functools.partial(_complex_dropout_kernel, p=float(p))

    out_r, out_i = pl.pallas_call(
        kernel,
        out_shape=(
            jax.ShapeDtypeStruct((rows, _LANE_W), jnp.float32),
            jax.ShapeDtypeStruct((rows, _LANE_W), jnp.float32),
        ),
        grid=(num_blocks,),
        in_specs=[blk, blk, blk],
        out_specs=(blk, blk),
        compiler_params=pltpu.CompilerParams(
            dimension_semantics=("parallel",),
        ),
    )(real2d, imag2d, u2d)

    out_r = out_r.reshape(-1)[:n].reshape(orig_shape)
    out_i = out_i.reshape(-1)[:n].reshape(orig_shape)
    return lax.complex(out_r, out_i)


if __name__ == "__main__":
    key = jax.random.PRNGKey(0)
    kr, ki, kd = jax.random.split(key, 3)
    # Small complex NCHW input: (batch=2, channels=4, H=16, W=16)
    real = jax.random.normal(kr, (2, 4, 16, 16), dtype=jnp.float32)
    imag = jax.random.normal(ki, (2, 4, 16, 16), dtype=jnp.float32)
    x = lax.complex(real, imag)  # complex64

    # Run the kernel with dropout p=0.1.
    out = jax.block_until_ready(complex_dropout(x, kd, p=0.1))
    assert out.shape == x.shape and out.dtype == jnp.complex64

    # Roughly p of the elements should be dropped (zeroed in both real and imag).
    dropped = float(jnp.mean((jnp.abs(out) == 0).astype(jnp.float32)))
    assert 0.02 < dropped < 0.30, dropped

    # With p=0.0 the module is (numerically) the identity up to the +1e-10 imag shift.
    out0 = jax.block_until_ready(complex_dropout(x, kd, p=0.0))
    assert jnp.allclose(jnp.real(out0), real, atol=1e-5)
    assert jnp.allclose(jnp.imag(out0), imag, atol=1e-5)

    print("KERNEL_OK")
</pallas_src>

<mosaic_0001>
module attributes {stable_mosaic.version = 11 : i64} {
  func.func @_complex_dropout_kernel(%arg0: i32, %arg1: memref<8x512xf32, #tpu.memory_space<vmem>>, %arg2: memref<8x512xf32, #tpu.memory_space<vmem>>, %arg3: memref<8x512xf32, #tpu.memory_space<vmem>>, %arg4: memref<8x512xf32, #tpu.memory_space<vmem>>, %arg5: memref<8x512xf32, #tpu.memory_space<vmem>>) attributes {dimension_semantics = [#tpu.dimension_semantics<parallel>], iteration_bounds = array<i64: 1>, scalar_prefetch = 0 : i64, scratch_operands = 0 : i64, tpu.core_type = #tpu.core_type<tc>, window_params = [{transform_indices = @transform_0, window_bounds = array<i64: 8, 512>}, {transform_indices = @transform_1, window_bounds = array<i64: 8, 512>}, {transform_indices = @transform_2, window_bounds = array<i64: 8, 512>}, {transform_indices = @transform_3, window_bounds = array<i64: 8, 512>}, {transform_indices = @transform_4, window_bounds = array<i64: 8, 512>}]} {
    %c0 = arith.constant 0 : index
    %c0_0 = arith.constant 0 : index
    %0 = vector.load %arg3[%c0, %c0_0] : memref<8x512xf32, #tpu.memory_space<vmem>>, vector<8x512xf32>
    %cst = arith.constant 1.000000e-01 : f32
    %1 = vector.broadcast %cst : f32 to vector<8x512xf32>
    %2 = arith.cmpf oge, %0, %1 : vector<8x512xf32>
    %cst_1 = arith.constant 1.11111116 : f32
    %cst_2 = arith.constant 0.000000e+00 : f32
    %3 = vector.broadcast %cst_1 : f32 to vector<8x512xf32>
    %4 = vector.broadcast %cst_2 : f32 to vector<8x512xf32>
    %5 = arith.select %2, %3, %4 : vector<8x512xi1>, vector<8x512xf32>
    %c0_3 = arith.constant 0 : index
    %c0_4 = arith.constant 0 : index
    %6 = vector.load %arg1[%c0_3, %c0_4] : memref<8x512xf32, #tpu.memory_space<vmem>>, vector<8x512xf32>
    %7 = arith.mulf %6, %5 : vector<8x512xf32>
    %c0_5 = arith.constant 0 : index
    %c0_6 = arith.constant 0 : index
    %8 = vector.load %arg4[%c0_5, %c0_6] : memref<8x512xf32, #tpu.memory_space<vmem>>, vector<8x512xf32>
    tpu.vector_store %arg4[%c0_5, %c0_6], %7 {strides = array<i32>} : memref<8x512xf32, #tpu.memory_space<vmem>>, vector<8x512xf32>,
    %c0_7 = arith.constant 0 : index
    %c0_8 = arith.constant 0 : index
    %9 = vector.load %arg2[%c0_7, %c0_8] : memref<8x512xf32, #tpu.memory_space<vmem>>, vector<8x512xf32>
    %cst_9 = arith.constant 1.000000e-10 : f32
    %10 = vector.broadcast %cst_9 : f32 to vector<8x512xf32>
    %11 = arith.addf %9, %10 : vector<8x512xf32>
    %12 = arith.mulf %11, %5 : vector<8x512xf32>
    %c0_10 = arith.constant 0 : index
    %c0_11 = arith.constant 0 : index
    %13 = vector.load %arg5[%c0_10, %c0_11] : memref<8x512xf32, #tpu.memory_space<vmem>>, vector<8x512xf32>
    tpu.vector_store %arg5[%c0_10, %c0_11], %12 {strides = array<i32>} : memref<8x512xf32, #tpu.memory_space<vmem>>, vector<8x512xf32>,
    return
  }
  func.func @transform_0(%arg0: i32) -> (i32, i32) {
    %c0_i32 = arith.constant 0 : i32
    %c0_i32_0 = arith.constant 0 : i32
    return %arg0, %c0_i32 : i32, i32
  }
  func.func @transform_1(%arg0: i32) -> (i32, i32) {
    %c0_i32 = arith.constant 0 : i32
    %c0_i32_0 = arith.constant 0 : i32
    return %arg0, %c0_i32 : i32, i32
  }
  func.func @transform_2(%arg0: i32) -> (i32, i32) {
    %c0_i32 = arith.constant 0 : i32
    %c0_i32_0 = arith.constant 0 : i32
    return %arg0, %c0_i32 : i32, i32
  }
  func.func @transform_3(%arg0: i32) -> (i32, i32) {
    %c0_i32 = arith.constant 0 : i32
    %c0_i32_0 = arith.constant 0 : i32
    return %arg0, %c0_i32 : i32, i32
  }
  func.func @transform_4(%arg0: i32) -> (i32, i32) {
    %c0_i32 = arith.constant 0 : i32
    %c0_i32_0 = arith.constant 0 : i32
    return %arg0, %c0_i32 : i32, i32
  }
}

</mosaic_0001>

<llo_original>
// kernel: custom-call.1
$region0: #{custom-call.1}
  %s0 = inlined_call_operand.hbm [shape: c64[2,4,16,16], index: 0, kind: input, shape index: {}]
  %s1 = inlined_call_operand.vmem [shape: f32[2,4,16,16], index: 1, kind: output, shape index: {}]
  %s2 = scalar_lea.hbm %s0, 2048
  $region1: #{custom-call.1} parent=0
    #allocation0 [shape = 's32[1]{0}', space=sflag, size = 0x4, scoped, tag = 'scoped memory for custom-call.1']
    %3 = vsyncpa [#allocation0], 0
    %s4 = sshll.u32 %s1, 4
    %s5 = int_to_ptr.vmem [resolvable:$true] %s4
    %7 = dma.hbm_to_vmem [thread:$0]  %s2, 2048, %s5, [#allocation0]
    %8 = dma.done [#allocation0], 2048
    %9 = vsyncpa [#allocation0], 1

// kernel: custom-call
$region0: #{custom-call}
  %s0 = inlined_call_operand.hbm [shape: c64[2,4,16,16], index: 0, kind: input, shape index: {}]
  %s1 = inlined_call_operand.vmem [shape: f32[2,4,16,16], index: 1, kind: output, shape index: {}]
  $region1: #{custom-call} parent=0
    #allocation0 [shape = 's32[1]{0}', space=sflag, size = 0x4, scoped, tag = 'scoped memory for custom-call']
    %2 = vsyncpa [#allocation0], 0
    %s3 = sshll.u32 %s1, 4
    %s4 = int_to_ptr.vmem [resolvable:$true] %s3
    %6 = dma.hbm_to_vmem [thread:$0]  %s0, 2048, %s4, [#allocation0]
    %7 = dma.done [#allocation0], 2048
    %8 = vsyncpa [#allocation0], 1

// kernel: custom-call.2
$region0: #{custom-call.2}
  %s0 = inlined_call_operand.vmem [shape: f32[2,4,16,16], index: 0, kind: input, shape index: {}]
  %s1 = inlined_call_operand.vmem [shape: f32[2,4,16,16], index: 1, kind: input, shape index: {}]
  %s2 = inlined_call_operand.hbm [shape: c64[2,4,16,16], index: 2, kind: output, shape index: {}]
  %s3 = scalar_lea.hbm %s2, 2048
  $region1: #{custom-call.2} parent=0
    #allocation0 [shape = 's32[1]{0}', space=sflag, size = 0x4, scoped, tag = 'scoped memory for custom-call.2']
    %4 = vsyncpa [#allocation0], 0
    %s5 = sshll.u32 %s0, 4
    %s6 = int_to_ptr.vmem [resolvable:$true] %s5
    %8 = dma.vmem_to_hbm [thread:$0]  %s6, 2048, %s2, [#allocation0]
    %9 = dma.done [#allocation0], 2048
    %10 = vsyncpa [#allocation0], 1
  $region2: #{custom-call.2} parent=0
    #allocation1 [shape = 's32[1]{0}', space=sflag, size = 0x4, scoped, tag = 'scoped memory for custom-call.2']
    %11 = vsyncpa [#allocation1], 0
    %s12 = sshll.u32 %s1, 4
    %s13 = int_to_ptr.vmem [resolvable:$true] %s12
    %15 = dma.vmem_to_hbm [thread:$0]  %s13, 2048, %s3, [#allocation1]
    %16 = dma.done [#allocation1], 2048
    %17 = vsyncpa [#allocation1], 1

// kernel: complex_dropout.1
$region0: #{complex_dropout.1}
  #allocation0 [shape = 'u32[]', space=smem, size = 0x4, offset = 0x4, fixed_abs, tag = 'smem constant byte address 0x4 - core index']
  #allocation1 [shape = 'u32[144,128]{1,0:T(1,128)}', space=vmem, size = 0x12000, scoped, tag = 'internal scratch']
  %s0 = inlined_call_operand.vmem [shape: f32[8,512], index: 0, kind: input, shape index: {}]
  %s1 = inlined_call_operand.vmem [shape: f32[8,512], index: 1, kind: input, shape index: {}]
  %s2 = inlined_call_operand.vmem [shape: f32[8,512], index: 2, kind: input, shape index: {}]
  %s3 = inlined_call_operand.vmem [shape: f32[8,512], index: 3, kind: output, shape index: {0}]
  %s4 = inlined_call_operand.vmem [shape: f32[8,512], index: 4, kind: output, shape index: {1}]
  %5 = xla_tuple %s3, %s4
  %s6 = sld [smem:[#allocation0]]
  $region30: #{complex_dropout.1} parent=0
    _
  %s8 = ssub.s32 1, %s6
  %s9 = scalar_select 0, %s8, %s6
  // Predicated region
  $region2: #{complex_dropout.1} parent=0 // pred_check
    _
  $region3: #{complex_dropout.1} parent=0 // pred_check_branch
    %11 = sbr.rel (0) target = $region5
  $region4: #{complex_dropout.1} parent=0 // pred_region
    _
  $region5: #{complex_dropout.1} parent=0 // pred_fallthru
    _
  // Predicated region
  $region6: #{complex_dropout.1} parent=0 // pred_check
    _
  $region7: #{complex_dropout.1} parent=0 // pred_check_branch
    %13 = sbr.rel (0) target = $region9
  $region8: #{complex_dropout.1} parent=0 // pred_region
    _
  $region9: #{complex_dropout.1} parent=0 // pred_fallthru
    _
  // Predicated region
  $region10: #{complex_dropout.1} parent=0 // pred_check
    _
  $region11: #{complex_dropout.1} parent=0 // pred_check_branch
    %15 = sbr.rel (0) target = $region13
  $region12: #{complex_dropout.1} parent=0 // pred_region
    _
  $region13: #{complex_dropout.1} parent=0 // pred_fallthru
    _
  %v16 = vld [vmem:[%s2] sm:$0xff]
  %v17 = vld [vmem:[%s2 + $0x8] sm:$0xff]
  %v18 = vld [vmem:[%s2 + $0x10] sm:$0xff]
  %v19 = vld [vmem:[%s2 + $0x18] sm:$0xff]
  %vm20 = vcmp.ge.f32.partialorder %v16, 0.1
  %vm21 = vcmp.ge.f32.partialorder %v17, 0.1
  %vm22 = vcmp.ge.f32.partialorder %v18, 0.1
  %vm23 = vcmp.ge.f32.partialorder %v19, 0.1
  %v24 = vsel %vm20, 1.1111112, 0.0
  %v25 = vsel %vm21, 1.1111112, 0.0
  %v26 = vsel %vm22, 1.1111112, 0.0
  %v27 = vsel %vm23, 1.1111112, 0.0
  %v28 = vld [vmem:[%s0] sm:$0xff]
  %v29 = vld [vmem:[%s0 + $0x8] sm:$0xff]
  %v30 = vld [vmem:[%s0 + $0x10] sm:$0xff]
  %v31 = vld [vmem:[%s0 + $0x18] sm:$0xff]
  %v32 = vmul.f32 %v28, %v24
  %v33 = vmul.f32 %v29, %v25
  %v34 = vmul.f32 %v30, %v26
  %v35 = vmul.f32 %v31, %v27
  %36 = vst [vmem:[%s3] sm:$0xff] %v32
  %37 = vst [vmem:[%s3 + $0x8] sm:$0xff] %v33
  %38 = vst [vmem:[%s3 + $0x10] sm:$0xff] %v34
  %39 = vst [vmem:[%s3 + $0x18] sm:$0xff] %v35
  %v40 = vld [vmem:[%s1] sm:$0xff]
  %v41 = vld [vmem:[%s1 + $0x8] sm:$0xff]
  %v42 = vld [vmem:[%s1 + $0x10] sm:$0xff]
  %v43 = vld [vmem:[%s1 + $0x18] sm:$0xff]
  %v44 = vadd.f32 %v40, 1e-10
  %v45 = vadd.f32 %v41, 1e-10
  %v46 = vadd.f32 %v42, 1e-10
  %v47 = vadd.f32 %v43, 1e-10
  %v48 = vmul.f32 %v44, %v24
  %v49 = vmul.f32 %v45, %v25
  %v50 = vmul.f32 %v46, %v26
  %v51 = vmul.f32 %v47, %v27
  %52 = vst [vmem:[%s4] sm:$0xff] %v48
  %53 = vst [vmem:[%s4 + $0x8] sm:$0xff] %v49
  %54 = vst [vmem:[%s4 + $0x10] sm:$0xff] %v50
  %55 = vst [vmem:[%s4 + $0x18] sm:$0xff] %v51
  // Predicated region
  $region14: #{complex_dropout.1} parent=0 // pred_check
    _
  $region15: #{complex_dropout.1} parent=0 // pred_check_branch
    %57 = sbr.rel (0) target = $region17
  $region16: #{complex_dropout.1} parent=0 // pred_region
    _
  $region17: #{complex_dropout.1} parent=0 // pred_fallthru
    _
  // Predicated region
  $region18: #{complex_dropout.1} parent=0 // pred_check
    _
  $region19: #{complex_dropout.1} parent=0 // pred_check_branch
    %59 = sbr.rel (0) target = $region21
  $region20: #{complex_dropout.1} parent=0 // pred_region
    _
  $region21: #{complex_dropout.1} parent=0 // pred_fallthru
    _
  // Predicated region
  $region22: #{complex_dropout.1} parent=0 // pred_check
    _
  $region23: #{complex_dropout.1} parent=0 // pred_check_branch
    %61 = sbr.rel (0) target = $region25
  $region24: #{complex_dropout.1} parent=0 // pred_region
    _
  $region25: #{complex_dropout.1} parent=0 // pred_fallthru
    _
  // Predicated region
  $region26: #{complex_dropout.1} parent=0 // pred_check
    _
  $region27: #{complex_dropout.1} parent=0 // pred_check_branch
    %63 = sbr.rel (0) target = $region29
  $region28: #{complex_dropout.1} parent=0 // pred_region
    _
  $region29: #{complex_dropout.1} parent=0 // pred_fallthru
    _

</llo_original>
